<compile_context>
chip_gen: v6e
topology: v6e:2x2x1
jax: 0.10.0
libtpu: 0.0.40
codegen_flags: <defaults>
</compile_context>

<pallas_src>
import functools

import jax
import jax.numpy as jnp
from jax.experimental import pallas as pl
from jax.experimental.pallas import tpu as pltpu


def _round_up(x, m):
    return (x + m - 1) // m * m


def _initial_model_kernel(x_ref, w_ref, b_ref, out_ref):
    """Four 128-lane-aligned matmul stages; activations stay L lanes wide."""
    L = w_ref.shape[0]              # lane-block width (128 at CartPole sizes)
    x = x_ref[...]                  # (bb, L) lane-padded state

    def stage(inp, col, relu):
        y = jnp.dot(inp, w_ref[:, col:col + L],
                    preferred_element_type=jnp.float32) + b_ref[:, col:col + L]
        return jnp.maximum(y, 0.0) if relu else y

    h = stage(x, 0, True)           # representation layer 1 + ReLU
    h = stage(h, L, True)           # representation layer 2 + ReLU
    hp = stage(h, 2 * L, True)      # fused [value | policy] hidden layer + ReLU
    head = stage(hp, 3 * L, False)  # block-diag final layer -> [value | policy]

    # Two unmasked, lane-aligned stores (lane-dense output).
    out_ref[:, 0:L] = h.astype(out_ref.dtype)
    out_ref[:, L:2 * L] = head.astype(out_ref.dtype)


def pack_params(params, obs_dim, hidden_dim, action_dim):
    """Pack the 12 per-layer tensors into a 128-lane-aligned weight/bias slab.

    Column blocks of width L = 128 (or next multiple of 128 if dims demand):
      [0:L)    repr L1:  rows 0:obs      -> w_r1 in cols 0:H           bias b_r1
      [L:2L)   repr L2:  rows 0:H        -> w_r2 in cols L:L+H         bias b_r2
      [2L:3L)  heads L1: rows 0:H        -> [w_v1 | w_p1] in 2L:2L+2H  bias [b_v1|b_p1]
      [3L:4L)  heads L2: rows 0:H  col 3L        -> w_v2               bias b_v2
                         rows H:2H cols 3L+1:+A  -> w_p2               bias b_p2
    All other entries are zero, so the fused matmuls are exactly equivalent.
    """
    (w_r1, b_r1, w_r2, b_r2,
     w_v1, b_v1, w_v2, b_v2,
     w_p1, b_p1, w_p2, b_p2) = params
    H, A = hidden_dim, action_dim
    L = max(128, _round_up(max(obs_dim, 2 * H, 1 + A), 128))

    w_slab = jnp.zeros((L, 4 * L), jnp.float32)
    w_slab = w_slab.at[:obs_dim, 0:H].set(w_r1)
    w_slab = w_slab.at[:H, L:L + H].set(w_r2)
    w_slab = w_slab.at[:H, 2 * L:2 * L + H].set(w_v1)
    w_slab = w_slab.at[:H, 2 * L + H:2 * L + 2 * H].set(w_p1)
    w_slab = w_slab.at[:H, 3 * L:3 * L + 1].set(w_v2)
    w_slab = w_slab.at[H:2 * H, 3 * L + 1:3 * L + 1 + A].set(w_p2)

    b_slab = jnp.zeros((1, 4 * L), jnp.float32)
    b_slab = b_slab.at[:, 0:H].set(b_r1)
    b_slab = b_slab.at[:, L:L + H].set(b_r2)
    b_slab = b_slab.at[:, 2 * L:2 * L + H].set(b_v1)
    b_slab = b_slab.at[:, 2 * L + H:2 * L + 2 * H].set(b_p1)
    b_slab = b_slab.at[:, 3 * L:3 * L + 1].set(b_v2)
    b_slab = b_slab.at[:, 3 * L + 1:3 * L + 1 + A].set(b_p2)
    return w_slab, b_slab


@functools.partial(jax.jit, static_argnames=("hidden_dim", "action_dim"))
def initial_model(state, w_slab, b_slab, *, hidden_dim, action_dim):
    B, obs_dim = state.shape
    H, A = hidden_dim, action_dim
    L = w_slab.shape[0]
    out_cols = 2 * L

    # Lane-pad the state to L so stage 1 needs no row-slice of the weight slab
    # and the input DMA is lane-dense.  Zero padding contributes exact zeros.
    if obs_dim < L:
        state = jnp.pad(state, ((0, 0), (0, L - obs_dim)))

    # Batch tiling: one block for small B; exactly 2 blocks for moderate B so
    # both v7x TensorCores get work on the "parallel" axis; 1024-row tiles for
    # very large B (near HBM roofline, few MiB of VMEM).
    if B <= 256:
        block_b = B
    elif B <= 2048:
        block_b = _round_up(pl.cdiv(B, 2), 8)
    else:
        block_b = 1024
    grid = (pl.cdiv(B, block_b),)

    packed = pl.pallas_call(
        _initial_model_kernel,
        grid=grid,
        in_specs=[
            pl.BlockSpec((block_b, L), lambda i: (i, 0)),
            pl.BlockSpec((L, 4 * L), lambda i: (0, 0)),   # resident weights
            pl.BlockSpec((1, 4 * L), lambda i: (0, 0)),   # resident biases
        ],
        out_specs=pl.BlockSpec((block_b, out_cols), lambda i: (i, 0)),
        out_shape=jax.ShapeDtypeStruct((B, out_cols), jnp.float32),
        compiler_params=pltpu.CompilerParams(
            dimension_semantics=("parallel",)),
    )(state, w_slab, b_slab)

    hidden = packed[:, :H]
    value = packed[:, L:L + 1]
    policy = packed[:, L + 1:L + 1 + A]
    return hidden, value, policy


def make_params(key, obs_dim, hidden_dim, action_dim):
    """Deterministic synthetic parameters (PyTorch-Linear-style uniform init)."""
    def linear(k, fan_in, fan_out):
        kw, kb = jax.random.split(k)
        bound = 1.0 / jnp.sqrt(float(fan_in))
        w = jax.random.uniform(kw, (fan_in, fan_out), jnp.float32, -bound, bound)
        b = jax.random.uniform(kb, (1, fan_out), jnp.float32, -bound, bound)
        return w, b

    keys = jax.random.split(key, 6)
    w_r1, b_r1 = linear(keys[0], obs_dim, hidden_dim)
    w_r2, b_r2 = linear(keys[1], hidden_dim, hidden_dim)
    w_v1, b_v1 = linear(keys[2], hidden_dim, hidden_dim)
    w_v2, b_v2 = linear(keys[3], hidden_dim, 1)
    w_p1, b_p1 = linear(keys[4], hidden_dim, hidden_dim)
    w_p2, b_p2 = linear(keys[5], hidden_dim, action_dim)
    return (w_r1, b_r1, w_r2, b_r2,
            w_v1, b_v1, w_v2, b_v2,
            w_p1, b_p1, w_p2, b_p2)


def reference(state, params):
    """Plain-JAX reference for correctness checking (unpacked params)."""
    (w_r1, b_r1, w_r2, b_r2,
     w_v1, b_v1, w_v2, b_v2,
     w_p1, b_p1, w_p2, b_p2) = params
    h = jnp.maximum(state @ w_r1 + b_r1, 0.0)
    h = jnp.maximum(h @ w_r2 + b_r2, 0.0)
    v = jnp.maximum(h @ w_v1 + b_v1, 0.0) @ w_v2 + b_v2
    p = jnp.maximum(h @ w_p1 + b_p1, 0.0) @ w_p2 + b_p2
    return h, v, p


if __name__ == "__main__":
    B, OBS, HID, ACT = 8, 4, 32, 2   # CartPole: 4-dim obs, 2 actions

    key = jax.random.PRNGKey(0)
    k_state, k_params = jax.random.split(key)
    state = jax.random.normal(k_state, (B, OBS), jnp.float32)
    params = make_params(k_params, OBS, HID, ACT)
    w_slab, b_slab = pack_params(params, OBS, HID, ACT)

    hidden, value, policy = initial_model(state, w_slab, b_slab,
                                          hidden_dim=HID, action_dim=ACT)
    jax.block_until_ready((hidden, value, policy))

    h_ref, v_ref, p_ref = reference(state, params)
    assert hidden.shape == (B, HID) and value.shape == (B, 1) and policy.shape == (B, ACT)
    assert jnp.allclose(hidden, h_ref, atol=1e-5)
    assert jnp.allclose(value, v_ref, atol=1e-5)
    assert jnp.allclose(policy, p_ref, atol=1e-5)

    print("KERNEL_OK")
</pallas_src>

<mosaic_0001>
module attributes {stable_mosaic.version = 11 : i64} {
  func.func @_initial_model_kernel(%arg0: i32, %arg1: memref<8x128xf32, #tpu.memory_space<vmem>>, %arg2: memref<128x512xf32, #tpu.memory_space<vmem>>, %arg3: memref<1x512xf32, #tpu.memory_space<vmem>>, %arg4: memref<8x256xf32, #tpu.memory_space<vmem>>) attributes {dimension_semantics = [#tpu.dimension_semantics<parallel>], iteration_bounds = array<i64: 1>, scalar_prefetch = 0 : i64, scratch_operands = 0 : i64, tpu.core_type = #tpu.core_type<tc>, window_params = [{transform_indices = @transform_0, window_bounds = array<i64: 8, 128>}, {pipeline_mode = #tpu.pipeline_mode<synchronous>, transform_indices = @transform_1, window_bounds = array<i64: 128, 512>}, {pipeline_mode = #tpu.pipeline_mode<synchronous>, transform_indices = @transform_2, window_bounds = array<i64: 1, 512>}, {transform_indices = @transform_3, window_bounds = array<i64: 8, 256>}]} {
    %c0 = arith.constant 0 : index
    %c0_0 = arith.constant 0 : index
    %0 = vector.load %arg1[%c0, %c0_0] : memref<8x128xf32, #tpu.memory_space<vmem>>, vector<8x128xf32>
    %c0_1 = arith.constant 0 : index
    %c0_2 = arith.constant 0 : index
    %1 = vector.load %arg2[%c0_1, %c0_2] : memref<128x512xf32, #tpu.memory_space<vmem>>, vector<128x128xf32>
    %cst = arith.constant dense<0.000000e+00> : vector<8x128xf32>
    %2 = tpu.matmul %0, %1, %cst {dimension_numbers = #tpu.dot_dimension_numbers<[1], [0], [0], [1], [0, 0, 1, 1], [], []>} : vector<8x128xf32>, vector<128x128xf32>, vector<8x128xf32> -> vector<8x128xf32>
    %c0_3 = arith.constant 0 : index
    %c0_4 = arith.constant 0 : index
    %3 = vector.load %arg3[%c0_3, %c0_4] : memref<1x512xf32, #tpu.memory_space<vmem>>, vector<1x128xf32>
    %4 = vector.broadcast %3 : vector<1x128xf32> to vector<8x128xf32>
    %5 = arith.addf %2, %4 : vector<8x128xf32>
    %cst_5 = arith.constant 0.000000e+00 : f32
    %6 = vector.broadcast %cst_5 : f32 to vector<8x128xf32>
    %7 = arith.maximumf %5, %6 : vector<8x128xf32>
    %c0_6 = arith.constant 0 : index
    %c128 = arith.constant 128 : index
    %8 = vector.load %arg2[%c0_6, %c128] : memref<128x512xf32, #tpu.memory_space<vmem>>, vector<128x128xf32>
    %cst_7 = arith.constant dense<0.000000e+00> : vector<8x128xf32>
    %9 = tpu.matmul %7, %8, %cst_7 {dimension_numbers = #tpu.dot_dimension_numbers<[1], [0], [0], [1], [0, 0, 1, 1], [], []>} : vector<8x128xf32>, vector<128x128xf32>, vector<8x128xf32> -> vector<8x128xf32>
    %c0_8 = arith.constant 0 : index
    %c128_9 = arith.constant 128 : index
    %10 = vector.load %arg3[%c0_8, %c128_9] : memref<1x512xf32, #tpu.memory_space<vmem>>, vector<1x128xf32>
    %11 = vector.broadcast %10 : vector<1x128xf32> to vector<8x128xf32>
    %12 = arith.addf %9, %11 : vector<8x128xf32>
    %cst_10 = arith.constant 0.000000e+00 : f32
    %13 = vector.broadcast %cst_10 : f32 to vector<8x128xf32>
    %14 = arith.maximumf %12, %13 : vector<8x128xf32>
    %c0_11 = arith.constant 0 : index
    %c256 = arith.constant 256 : index
    %15 = vector.load %arg2[%c0_11, %c256] : memref<128x512xf32, #tpu.memory_space<vmem>>, vector<128x128xf32>
    %cst_12 = arith.constant dense<0.000000e+00> : vector<8x128xf32>
    %16 = tpu.matmul %14, %15, %cst_12 {dimension_numbers = #tpu.dot_dimension_numbers<[1], [0], [0], [1], [0, 0, 1, 1], [], []>} : vector<8x128xf32>, vector<128x128xf32>, vector<8x128xf32> -> vector<8x128xf32>
    %c0_13 = arith.constant 0 : index
    %c256_14 = arith.constant 256 : index
    %17 = vector.load %arg3[%c0_13, %c256_14] : memref<1x512xf32, #tpu.memory_space<vmem>>, vector<1x128xf32>
    %18 = vector.broadcast %17 : vector<1x128xf32> to vector<8x128xf32>
    %19 = arith.addf %16, %18 : vector<8x128xf32>
    %cst_15 = arith.constant 0.000000e+00 : f32
    %20 = vector.broadcast %cst_15 : f32 to vector<8x128xf32>
    %21 = arith.maximumf %19, %20 : vector<8x128xf32>
    %c0_16 = arith.constant 0 : index
    %c384 = arith.constant 384 : index
    %22 = vector.load %arg2[%c0_16, %c384] : memref<128x512xf32, #tpu.memory_space<vmem>>, vector<128x128xf32>
    %cst_17 = arith.constant dense<0.000000e+00> : vector<8x128xf32>
    %23 = tpu.matmul %21, %22, %cst_17 {dimension_numbers = #tpu.dot_dimension_numbers<[1], [0], [0], [1], [0, 0, 1, 1], [], []>} : vector<8x128xf32>, vector<128x128xf32>, vector<8x128xf32> -> vector<8x128xf32>
    %c0_18 = arith.constant 0 : index
    %c384_19 = arith.constant 384 : index
    %24 = vector.load %arg3[%c0_18, %c384_19] : memref<1x512xf32, #tpu.memory_space<vmem>>, vector<1x128xf32>
    %25 = vector.broadcast %24 : vector<1x128xf32> to vector<8x128xf32>
    %26 = arith.addf %23, %25 : vector<8x128xf32>
    %c0_20 = arith.constant 0 : index
    %c0_21 = arith.constant 0 : index
    %27 = vector.load %arg4[%c0_20, %c0_21] : memref<8x256xf32, #tpu.memory_space<vmem>>, vector<8x128xf32>
    tpu.vector_store %arg4[%c0_20, %c0_21], %14 {strides = array<i32>} : memref<8x256xf32, #tpu.memory_space<vmem>>, vector<8x128xf32>,
    %c0_22 = arith.constant 0 : index
    %c128_23 = arith.constant 128 : index
    %28 = vector.load %arg4[%c0_22, %c128_23] : memref<8x256xf32, #tpu.memory_space<vmem>>, vector<8x128xf32>
    tpu.vector_store %arg4[%c0_22, %c128_23], %26 {strides = array<i32>} : memref<8x256xf32, #tpu.memory_space<vmem>>, vector<8x128xf32>,
    return
  }
  func.func @transform_0(%arg0: i32) -> (i32, i32) {
    %c0_i32 = arith.constant 0 : i32
    %c0_i32_0 = arith.constant 0 : i32
    return %arg0, %c0_i32 : i32, i32
  }
  func.func @transform_1(%arg0: i32) -> (i32, i32) {
    %c0_i32 = arith.constant 0 : i32
    %c0_i32_0 = arith.constant 0 : i32
    %c0_i32_1 = arith.constant 0 : i32
    return %c0_i32, %c0_i32_0 : i32, i32
  }
  func.func @transform_2(%arg0: i32) -> (i32, i32) {
    %c0_i32 = arith.constant 0 : i32
    %c0_i32_0 = arith.constant 0 : i32
    %c0_i32_1 = arith.constant 0 : i32
    return %c0_i32, %c0_i32_0 : i32, i32
  }
  func.func @transform_3(%arg0: i32) -> (i32, i32) {
    %c0_i32 = arith.constant 0 : i32
    %c0_i32_0 = arith.constant 0 : i32
    return %arg0, %c0_i32 : i32, i32
  }
}

</mosaic_0001>

<llo_original>
// kernel: initial_model.1
$region0: #{initial_model.1}
  #allocation0 [shape = 'u32[]', space=smem, size = 0x4, offset = 0x4, fixed_abs, tag = 'smem constant byte address 0x4 - core index']
  #allocation1 [shape = 'u32[144,128]{1,0:T(1,128)}', space=vmem, size = 0x12000, scoped, tag = 'internal scratch']
  %s0 = inlined_call_operand.vmem [shape: f32[8,128], index: 0, kind: input, shape index: {}]
  %s1 = inlined_call_operand.hbm [shape: f32[128,512], index: 1, kind: input, shape index: {}]
  %s2 = inlined_call_operand.vmem [shape: f32[1,512], index: 2, kind: input, shape index: {}]
  %s3 = inlined_call_operand.vmem [shape: f32[8,256], index: 3, kind: output, shape index: {}]
  %s4 = sld [smem:[#allocation0]]
  $region26: #{initial_model.1} parent=0
    _
  %s6 = ssub.s32 1, %s4
  %s7 = scalar_select 0, %s6, %s4
  $region1: #{initial_model.1} parent=0
    #allocation2 [shape = 'u8[262144]{0}', space=vmem, size = 0x40000, scoped, tag = 'input window, operand 1, single buffered']
    #allocation3 [shape = 's32[1]{0}', space=sflag, size = 0x4, scoped, tag = 'scoped memory for initial_model.1']
    %8 = vsyncpa [#allocation3], 0
    // Predicated region
    $region2: #{initial_model.1} parent=1 // pred_check
      _
    $region3: #{initial_model.1} parent=1 // pred_check_branch
      %10 = sbr.rel (0) target = $region5
    $region4: #{initial_model.1} parent=1 // pred_region
      _
    $region5: #{initial_model.1} parent=1 // pred_fallthru
      _
    // Predicated region
    $region6: #{initial_model.1} parent=1 // pred_check
      _
    $region7: #{initial_model.1} parent=1 // pred_check_branch
      %12 = sbr.rel (0) target = $region9
    $region8: #{initial_model.1} parent=1 // pred_region
      %s14 = ssub.s32 8192, 8192
      %15 = vsyncadd [#allocation3], %s14
      %s16 = sshll.u32 [#allocation2], 4
      %s17 = int_to_ptr.vmem [resolvable:$true] %s16
      %22 = dma.hbm_to_vmem [thread:$0]  %s1, 8192, %s17, [#allocation3], 512, 512, 32
    $region9: #{initial_model.1} parent=1 // pred_fallthru
      _
    // Predicated region
    $region10: #{initial_model.1} parent=1 // pred_check
      _
    $region11: #{initial_model.1} parent=1 // pred_check_branch
      %24 = sbr.rel (0) target = $region13
    $region12: #{initial_model.1} parent=1 // pred_region
      _
    $region13: #{initial_model.1} parent=1 // pred_fallthru
      _
    // Predicated region
    $region14: #{initial_model.1} parent=1 // pred_check
      _
    $region15: #{initial_model.1} parent=1 // pred_check_branch
      %26 = sbr.rel (0) target = $region17
    $region16: #{initial_model.1} parent=1 // pred_region
      %27 = dma.done [#allocation3], 8192
    $region17: #{initial_model.1} parent=1 // pred_fallthru
      _
    %v28 = vld [vmem:[%s0] sm:$0xff]
    %v29 = vld [vmem:[#allocation2] sm:$0xff]
    %v30 = vld [vmem:[#allocation2 + $0x20] sm:$0xff]
    %v31 = vld [vmem:[#allocation2 + $0x40] sm:$0xff]
    %v32 = vld [vmem:[#allocation2 + $0x60] sm:$0xff]
    %v33 = vld [vmem:[#allocation2 + $0x80] sm:$0xff]
    %v34 = vld [vmem:[#allocation2 + $0xa0] sm:$0xff]
    %v35 = vld [vmem:[#allocation2 + $0xc0] sm:$0xff]
    %v36 = vld [vmem:[#allocation2 + $0xe0] sm:$0xff]
    %v37 = vld [vmem:[#allocation2 + $0x100] sm:$0xff]
    %v38 = vld [vmem:[#allocation2 + $0x120] sm:$0xff]
    %v39 = vld [vmem:[#allocation2 + $0x140] sm:$0xff]
    %v40 = vld [vmem:[#allocation2 + $0x160] sm:$0xff]
    %v41 = vld [vmem:[#allocation2 + $0x180] sm:$0xff]
    %v42 = vld [vmem:[#allocation2 + $0x1a0] sm:$0xff]
    %v43 = vld [vmem:[#allocation2 + $0x1c0] sm:$0xff]
    %v44 = vld [vmem:[#allocation2 + $0x1e0] sm:$0xff]
    %v45 = vld [vmem:[%s2] sm:$0x1]
    %v47 = vlaneseq
    %v48 = vshrl.u32 %v47, 7
    %v49 = vsub.s32 0, %v48
    %v50 = vrot.slane %v45, %v49
    %52 = vmatprep.subr.mxu0 0.0
    %53 = vmatpush1.msra.mxu0 %v44
    %54 = vmatprep.subr.mxu0 0.0
    %55 = vmatpush1.msra.mxu0 %v43
    %56 = vmatprep.subr.mxu0 0.0
    %57 = vmatpush1.msra.mxu0 %v42
    %58 = vmatprep.subr.mxu0 0.0
    %59 = vmatpush1.msra.mxu0 %v41
    %60 = vmatprep.subr.mxu0 0.0
    %61 = vmatpush1.msra.mxu0 %v40
    %62 = vmatprep.subr.mxu0 0.0
    %63 = vmatpush1.msra.mxu0 %v39
    %64 = vmatprep.subr.mxu0 0.0
    %65 = vmatpush1.msra.mxu0 %v38
    %66 = vmatprep.subr.mxu0 0.0
    %67 = vmatpush1.msra.mxu0 %v37
    %68 = vmatprep.subr.mxu0 0.0
    %69 = vmatpush1.msra.mxu0 %v36
    %70 = vmatprep.subr.mxu0 0.0
    %71 = vmatpush1.msra.mxu0 %v35
    %72 = vmatprep.subr.mxu0 0.0
    %73 = vmatpush1.msra.mxu0 %v34
    %74 = vmatprep.subr.mxu0 0.0
    %75 = vmatpush1.msra.mxu0 %v33
    %76 = vmatprep.subr.mxu0 0.0
    %77 = vmatpush1.msra.mxu0 %v32
    %78 = vmatprep.subr.mxu0 0.0
    %79 = vmatpush1.msra.mxu0 %v31
    %80 = vmatprep.subr.mxu0 0.0
    %81 = vmatpush1.msra.mxu0 %v30
    %82 = vmatprep.subr.mxu0 0.0
    %83 = vmatpush1.msra.mxu0 %v29
    %84 = vmatprep.subr.mxu0 0.0
    %85 = vmatpush2.msra.mxu0 0.0
    %86 = vmatprep.subr.mxu0 0.0
    %87 = vmatpush2.msra.mxu0 0.0
    %88 = vmatprep.subr.mxu0 0.0
    %89 = vmatpush2.msra.mxu0 0.0
    %90 = vmatprep.subr.mxu0 0.0
    %91 = vmatpush2.msra.mxu0 0.0
    %92 = vmatprep.subr.mxu0 0.0
    %93 = vmatpush2.msra.mxu0 0.0
    %94 = vmatprep.subr.mxu0 0.0
    %95 = vmatpush2.msra.mxu0 0.0
    %96 = vmatprep.subr.mxu0 0.0
    %97 = vmatpush2.msra.mxu0 0.0
    %98 = vmatprep.subr.mxu0 0.0
    %99 = vmatpush2.msra.mxu0 0.0
    %100 = vmatprep.subr.mxu0 0.0
    %101 = vmatpush2.msra.mxu0 0.0
    %102 = vmatprep.subr.mxu0 0.0
    %103 = vmatpush2.msra.mxu0 0.0
    %104 = vmatprep.subr.mxu0 0.0
    %105 = vmatpush2.msra.mxu0 0.0
    %106 = vmatprep.subr.mxu0 0.0
    %107 = vmatpush2.msra.mxu0 0.0
    %108 = vmatprep.subr.mxu0 0.0
    %109 = vmatpush2.msra.mxu0 0.0
    %110 = vmatprep.subr.mxu0 0.0
    %111 = vmatpush2.msra.mxu0 0.0
    %112 = vmatprep.subr.mxu0 0.0
    %113 = vmatpush2.msra.mxu0 0.0
    %114 = vmatprep.subr.mxu0 0.0
    %115 = vmatpush2.msra.mxu0 0.0
    %116 = vmatprep.mubr.f32.mxu0 0.0
    %117 = vmatmul.mubr.f32.gmra.mxu0 %v28
    %v118 = vpop.f32.mrf.mxu0
    %v119 = vadd.f32 %v50, %v118
    %v120 = vpop.f32.mrf.mxu0
    %121 = vdwg.mxu0
    %v122 = vmax.f32 %v119, 0.0
    %v123 = vld [vmem:[#allocation2 + $0x8] sm:$0xff]
    %v124 = vld [vmem:[#allocation2 + $0x28] sm:$0xff]
    %v125 = vld [vmem:[#allocation2 + $0x48] sm:$0xff]
    %v126 = vld [vmem:[#allocation2 + $0x68] sm:$0xff]
    %v127 = vld [vmem:[#allocation2 + $0x88] sm:$0xff]
    %v128 = vld [vmem:[#allocation2 + $0xa8] sm:$0xff]
    %v129 = vld [vmem:[#allocation2 + $0xc8] sm:$0xff]
    %v130 = vld [vmem:[#allocation2 + $0xe8] sm:$0xff]
    %v131 = vld [vmem:[#allocation2 + $0x108] sm:$0xff]
    %v132 = vld [vmem:[#allocation2 + $0x128] sm:$0xff]
    %v133 = vld [vmem:[#allocation2 + $0x148] sm:$0xff]
    %v134 = vld [vmem:[#allocation2 + $0x168] sm:$0xff]
    %v135 = vld [vmem:[#allocation2 + $0x188] sm:$0xff]
    %v136 = vld [vmem:[#allocation2 + $0x1a8] sm:$0xff]
    %v137 = vld [vmem:[#allocation2 + $0x1c8] sm:$0xff]
    %v138 = vld [vmem:[#allocation2 + $0x1e8] sm:$0xff]
    %v139 = vld [vmem:[%s2 + $0x1] sm:$0x1]
    %v141 = vlaneseq
    %v142 = vshrl.u32 %v141, 7
    %v143 = vsub.s32 0, %v142
    %v144 = vrot.slane %v139, %v143
    %146 = vmatprep.subr.mxu0 0.0
    %147 = vmatpush1.msra.mxu0 %v138
    %148 = vmatprep.subr.mxu0 0.0
    %149 = vmatpush1.msra.mxu0 %v137
    %150 = vmatprep.subr.mxu0 0.0
    %151 = vmatpush1.msra.mxu0 %v136
    %152 = vmatprep.subr.mxu0 0.0
    %153 = vmatpush1.msra.mxu0 %v135
    %154 = vmatprep.subr.mxu0 0.0
    %155 = vmatpush1.msra.mxu0 %v134
    %156 = vmatprep.subr.mxu0 0.0
    %157 = vmatpush1.msra.mxu0 %v133
    %158 = vmatprep.subr.mxu0 0.0
    %159 = vmatpush1.msra.mxu0 %v132
    %160 = vmatprep.subr.mxu0 0.0
    %161 = vmatpush1.msra.mxu0 %v131
    %162 = vmatprep.subr.mxu0 0.0
    %163 = vmatpush1.msra.mxu0 %v130
    %164 = vmatprep.subr.mxu0 0.0
    %165 = vmatpush1.msra.mxu0 %v129
    %166 = vmatprep.subr.mxu0 0.0
    %167 = vmatpush1.msra.mxu0 %v128
    %168 = vmatprep.subr.mxu0 0.0
    %169 = vmatpush1.msra.mxu0 %v127
    %170 = vmatprep.subr.mxu0 0.0
    %171 = vmatpush1.msra.mxu0 %v126
    %172 = vmatprep.subr.mxu0 0.0
    %173 = vmatpush1.msra.mxu0 %v125
    %174 = vmatprep.subr.mxu0 0.0
    %175 = vmatpush1.msra.mxu0 %v124
    %176 = vmatprep.subr.mxu0 0.0
    %177 = vmatpush1.msra.mxu0 %v123
    %178 = vmatprep.subr.mxu0 0.0
    %179 = vmatpush2.msra.mxu0 0.0
    %180 = vmatprep.subr.mxu0 0.0
    %181 = vmatpush2.msra.mxu0 0.0
    %182 = vmatprep.subr.mxu0 0.0
    %183 = vmatpush2.msra.mxu0 0.0
    %184 = vmatprep.subr.mxu0 0.0
    %185 = vmatpush2.msra.mxu0 0.0
    %186 = vmatprep.subr.mxu0 0.0
    %187 = vmatpush2.msra.mxu0 0.0
    %188 = vmatprep.subr.mxu0 0.0
    %189 = vmatpush2.msra.mxu0 0.0
    %190 = vmatprep.subr.mxu0 0.0
    %191 = vmatpush2.msra.mxu0 0.0
    %192 = vmatprep.subr.mxu0 0.0
    %193 = vmatpush2.msra.mxu0 0.0
    %194 = vmatprep.subr.mxu0 0.0
    %195 = vmatpush2.msra.mxu0 0.0
    %196 = vmatprep.subr.mxu0 0.0
    %197 = vmatpush2.msra.mxu0 0.0
    %198 = vmatprep.subr.mxu0 0.0
    %199 = vmatpush2.msra.mxu0 0.0
    %200 = vmatprep.subr.mxu0 0.0
    %201 = vmatpush2.msra.mxu0 0.0
    %202 = vmatprep.subr.mxu0 0.0
    %203 = vmatpush2.msra.mxu0 0.0
    %204 = vmatprep.subr.mxu0 0.0
    %205 = vmatpush2.msra.mxu0 0.0
    %206 = vmatprep.subr.mxu0 0.0
    %207 = vmatpush2.msra.mxu0 0.0
    %208 = vmatprep.subr.mxu0 0.0
    %209 = vmatpush2.msra.mxu0 0.0
    %210 = vmatprep.mubr.f32.mxu0 0.0
    %211 = vmatmul.mubr.f32.gmra.mxu0 %v122
    %v212 = vpop.f32.mrf.mxu0
    %v213 = vadd.f32 %v144, %v212
    %v214 = vpop.f32.mrf.mxu0
    %215 = vdwg.mxu0
    %v216 = vmax.f32 %v213, 0.0
    %v217 = vld [vmem:[#allocation2 + $0x10] sm:$0xff]
    %v218 = vld [vmem:[#allocation2 + $0x30] sm:$0xff]
    %v219 = vld [vmem:[#allocation2 + $0x50] sm:$0xff]
    %v220 = vld [vmem:[#allocation2 + $0x70] sm:$0xff]
    %v221 = vld [vmem:[#allocation2 + $0x90] sm:$0xff]
    %v222 = vld [vmem:[#allocation2 + $0xb0] sm:$0xff]
    %v223 = vld [vmem:[#allocation2 + $0xd0] sm:$0xff]
    %v224 = vld [vmem:[#allocation2 + $0xf0] sm:$0xff]
    %v225 = vld [vmem:[#allocation2 + $0x110] sm:$0xff]
    %v226 = vld [vmem:[#allocation2 + $0x130] sm:$0xff]
    %v227 = vld [vmem:[#allocation2 + $0x150] sm:$0xff]
    %v228 = vld [vmem:[#allocation2 + $0x170] sm:$0xff]
    %v229 = vld [vmem:[#allocation2 + $0x190] sm:$0xff]
    %v230 = vld [vmem:[#allocation2 + $0x1b0] sm:$0xff]
    %v231 = vld [vmem:[#allocation2 + $0x1d0] sm:$0xff]
    %v232 = vld [vmem:[#allocation2 + $0x1f0] sm:$0xff]
    %v233 = vld [vmem:[%s2 + $0x2] sm:$0x1]
    %v235 = vlaneseq
    %v236 = vshrl.u32 %v235, 7
    %v237 = vsub.s32 0, %v236
    %v238 = vrot.slane %v233, %v237
    %240 = vmatprep.subr.mxu0 0.0
    %241 = vmatpush1.msra.mxu0 %v232
    %242 = vmatprep.subr.mxu0 0.0
    %243 = vmatpush1.msra.mxu0 %v231
    %244 = vmatprep.subr.mxu0 0.0
    %245 = vmatpush1.msra.mxu0 %v230
    %246 = vmatprep.subr.mxu0 0.0
    %247 = vmatpush1.msra.mxu0 %v229
    %248 = vmatprep.subr.mxu0 0.0
    %249 = vmatpush1.msra.mxu0 %v228
    %250 = vmatprep.subr.mxu0 0.0
    %251 = vmatpush1.msra.mxu0 %v227
    %252 = vmatprep.subr.mxu0 0.0
    %253 = vmatpush1.msra.mxu0 %v226
    %254 = vmatprep.subr.mxu0 0.0
    %255 = vmatpush1.msra.mxu0 %v225
    %256 = vmatprep.subr.mxu0 0.0
    %257 = vmatpush1.msra.mxu0 %v224
    %258 = vmatprep.subr.mxu0 0.0
    %259 = vmatpush1.msra.mxu0 %v223
    %260 = vmatprep.subr.mxu0 0.0
    %261 = vmatpush1.msra.mxu0 %v222
    %262 = vmatprep.subr.mxu0 0.0
    %263 = vmatpush1.msra.mxu0 %v221
    %264 = vmatprep.subr.mxu0 0.0
    %265 = vmatpush1.msra.mxu0 %v220
    %266 = vmatprep.subr.mxu0 0.0
    %267 = vmatpush1.msra.mxu0 %v219
    %268 = vmatprep.subr.mxu0 0.0
    %269 = vmatpush1.msra.mxu0 %v218
    %270 = vmatprep.subr.mxu0 0.0
    %271 = vmatpush1.msra.mxu0 %v217
    %272 = vmatprep.subr.mxu0 0.0
    %273 = vmatpush2.msra.mxu0 0.0
    %274 = vmatprep.subr.mxu0 0.0
    %275 = vmatpush2.msra.mxu0 0.0
    %276 = vmatprep.subr.mxu0 0.0
    %277 = vmatpush2.msra.mxu0 0.0
    %278 = vmatprep.subr.mxu0 0.0
    %279 = vmatpush2.msra.mxu0 0.0
    %280 = vmatprep.subr.mxu0 0.0
    %281 = vmatpush2.msra.mxu0 0.0
    %282 = vmatprep.subr.mxu0 0.0
    %283 = vmatpush2.msra.mxu0 0.0
    %284 = vmatprep.subr.mxu0 0.0
    %285 = vmatpush2.msra.mxu0 0.0
    %286 = vmatprep.subr.mxu0 0.0
    %287 = vmatpush2.msra.mxu0 0.0
    %288 = vmatprep.subr.mxu0 0.0
    %289 = vmatpush2.msra.mxu0 0.0
    %290 = vmatprep.subr.mxu0 0.0
    %291 = vmatpush2.msra.mxu0 0.0
    %292 = vmatprep.subr.mxu0 0.0
    %293 = vmatpush2.msra.mxu0 0.0
    %294 = vmatprep.subr.mxu0 0.0
    %295 = vmatpush2.msra.mxu0 0.0
    %296 = vmatprep.subr.mxu0 0.0
    %297 = vmatpush2.msra.mxu0 0.0
    %298 = vmatprep.subr.mxu0 0.0
    %299 = vmatpush2.msra.mxu0 0.0
    %300 = vmatprep.subr.mxu0 0.0
    %301 = vmatpush2.msra.mxu0 0.0
    %302 = vmatprep.subr.mxu0 0.0
    %303 = vmatpush2.msra.mxu0 0.0
    %304 = vmatprep.mubr.f32.mxu0 0.0
    %305 = vmatmul.mubr.f32.gmra.mxu0 %v216
    %v306 = vpop.f32.mrf.mxu0
    %v307 = vadd.f32 %v238, %v306
    %v308 = vpop.f32.mrf.mxu0
    %309 = vdwg.mxu0
    %v310 = vmax.f32 %v307, 0.0
    %v311 = vld [vmem:[#allocation2 + $0x18] sm:$0xff]
    %v312 = vld [vmem:[#allocation2 + $0x38] sm:$0xff]
    %v313 = vld [vmem:[#allocation2 + $0x58] sm:$0xff]
    %v314 = vld [vmem:[#allocation2 + $0x78] sm:$0xff]
    %v315 = vld [vmem:[#allocation2 + $0x98] sm:$0xff]
    %v316 = vld [vmem:[#allocation2 + $0xb8] sm:$0xff]
    %v317 = vld [vmem:[#allocation2 + $0xd8] sm:$0xff]
    %v318 = vld [vmem:[#allocation2 + $0xf8] sm:$0xff]
    %v319 = vld [vmem:[#allocation2 + $0x118] sm:$0xff]
    %v320 = vld [vmem:[#allocation2 + $0x138] sm:$0xff]
    %v321 = vld [vmem:[#allocation2 + $0x158] sm:$0xff]
    %v322 = vld [vmem:[#allocation2 + $0x178] sm:$0xff]
    %v323 = vld [vmem:[#allocation2 + $0x198] sm:$0xff]
    %v324 = vld [vmem:[#allocation2 + $0x1b8] sm:$0xff]
    %v325 = vld [vmem:[#allocation2 + $0x1d8] sm:$0xff]
    %v326 = vld [vmem:[#allocation2 + $0x1f8] sm:$0xff]
    %v327 = vld [vmem:[%s2 + $0x3] sm:$0x1]
    %v329 = vlaneseq
    %v330 = vshrl.u32 %v329, 7
    %v331 = vsub.s32 0, %v330
    %v332 = vrot.slane %v327, %v331
    %334 = vmatprep.subr.mxu0 0.0
    %335 = vmatpush1.msra.mxu0 %v326
    %336 = vmatprep.subr.mxu0 0.0
    %337 = vmatpush1.msra.mxu0 %v325
    %338 = vmatprep.subr.mxu0 0.0
    %339 = vmatpush1.msra.mxu0 %v324
    %340 = vmatprep.subr.mxu0 0.0
    %341 = vmatpush1.msra.mxu0 %v323
    %342 = vmatprep.subr.mxu0 0.0
    %343 = vmatpush1.msra.mxu0 %v322
    %344 = vmatprep.subr.mxu0 0.0
    %345 = vmatpush1.msra.mxu0 %v321
    %346 = vmatprep.subr.mxu0 0.0
    %347 = vmatpush1.msra.mxu0 %v320
    %348 = vmatprep.subr.mxu0 0.0
    %349 = vmatpush1.msra.mxu0 %v319
    %350 = vmatprep.subr.mxu0 0.0
    %351 = vmatpush1.msra.mxu0 %v318
    %352 = vmatprep.subr.mxu0 0.0
    %353 = vmatpush1.msra.mxu0 %v317
    %354 = vmatprep.subr.mxu0 0.0
    %355 = vmatpush1.msra.mxu0 %v316
    %356 = vmatprep.subr.mxu0 0.0
    %357 = vmatpush1.msra.mxu0 %v315
    %358 = vmatprep.subr.mxu0 0.0
    %359 = vmatpush1.msra.mxu0 %v314
    %360 = vmatprep.subr.mxu0 0.0
    %361 = vmatpush1.msra.mxu0 %v313
    %362 = vmatprep.subr.mxu0 0.0
    %363 = vmatpush1.msra.mxu0 %v312
    %364 = vmatprep.subr.mxu0 0.0
    %365 = vmatpush1.msra.mxu0 %v311
    %366 = vmatprep.subr.mxu0 0.0
    %367 = vmatpush2.msra.mxu0 0.0
    %368 = vmatprep.subr.mxu0 0.0
    %369 = vmatpush2.msra.mxu0 0.0
    %370 = vmatprep.subr.mxu0 0.0
    %371 = vmatpush2.msra.mxu0 0.0
    %372 = vmatprep.subr.mxu0 0.0
    %373 = vmatpush2.msra.mxu0 0.0
    %374 = vmatprep.subr.mxu0 0.0
    %375 = vmatpush2.msra.mxu0 0.0
    %376 = vmatprep.subr.mxu0 0.0
    %377 = vmatpush2.msra.mxu0 0.0
    %378 = vmatprep.subr.mxu0 0.0
    %379 = vmatpush2.msra.mxu0 0.0
    %380 = vmatprep.subr.mxu0 0.0
    %381 = vmatpush2.msra.mxu0 0.0
    %382 = vmatprep.subr.mxu0 0.0
    %383 = vmatpush2.msra.mxu0 0.0
    %384 = vmatprep.subr.mxu0 0.0
    %385 = vmatpush2.msra.mxu0 0.0
    %386 = vmatprep.subr.mxu0 0.0
    %387 = vmatpush2.msra.mxu0 0.0
    %388 = vmatprep.subr.mxu0 0.0
    %389 = vmatpush2.msra.mxu0 0.0
    %390 = vmatprep.subr.mxu0 0.0
    %391 = vmatpush2.msra.mxu0 0.0
    %392 = vmatprep.subr.mxu0 0.0
    %393 = vmatpush2.msra.mxu0 0.0
    %394 = vmatprep.subr.mxu0 0.0
    %395 = vmatpush2.msra.mxu0 0.0
    %396 = vmatprep.subr.mxu0 0.0
    %397 = vmatpush2.msra.mxu0 0.0
    %398 = vmatprep.mubr.f32.mxu0 0.0
    %399 = vmatmul.mubr.f32.gmra.mxu0 %v310
    %v400 = vpop.f32.mrf.mxu0
    %v401 = vadd.f32 %v332, %v400
    %v402 = vpop.f32.mrf.mxu0
    %403 = vdwg.mxu0
    %404 = vst [vmem:[%s3] sm:$0xff] %v216
    %405 = vst [vmem:[%s3 + $0x8] sm:$0xff] %v401
    // Predicated region
    $region18: #{initial_model.1} parent=1 // pred_check
      _
    $region19: #{initial_model.1} parent=1 // pred_check_branch
      %407 = sbr.rel (0) target = $region21
    $region20: #{initial_model.1} parent=1 // pred_region
      _
    $region21: #{initial_model.1} parent=1 // pred_fallthru
      _
    // Predicated region
    $region22: #{initial_model.1} parent=1 // pred_check
      _
    $region23: #{initial_model.1} parent=1 // pred_check_branch
      %409 = sbr.rel (0) target = $region25
    $region24: #{initial_model.1} parent=1 // pred_region
      _
    $region25: #{initial_model.1} parent=1 // pred_fallthru
      _
    %410 = vsyncpa [#allocation3], 1

</llo_original>
